<compile_context>
chip_gen: v6e
topology: v6e:2x2x1
jax: 0.10.0
libtpu: 0.0.40
codegen_flags: <defaults>
</compile_context>

<pallas_src>
import jax
import jax.numpy as jnp
from jax.experimental import pallas as pl
from jax.experimental.pallas import tpu as pltpu


def _round_up(x, m):
    return ((x + m - 1) // m) * m


def autoencoder_kernel(x_ref,
                       w1_ref, b1_ref,
                       w2_ref, b2_ref,
                       w3_ref, b3_ref,
                       w4_ref, b4_ref,
                       out_ref):
    # x tile: (TB, D) bf16 (astype is a no-op when the input is already bf16).
    x = x_ref[...].astype(jnp.bfloat16)

    # encoder: Linear -> ReLU -> Linear -> ReLU
    # Large K=D matmul: bf16 operands, f32 accumulation on the MXU.
    h1 = jnp.dot(x, w1_ref[...], preferred_element_type=jnp.float32) + b1_ref[...]
    h1 = jnp.maximum(h1, 0.0)

    z = jnp.dot(h1, w2_ref[...], preferred_element_type=jnp.float32) + b2_ref[...]
    z = jnp.maximum(z, 0.0)

    # decoder: Linear -> ReLU -> Linear -> Sigmoid
    h2 = jnp.dot(z, w3_ref[...], preferred_element_type=jnp.float32) + b3_ref[...]
    h2 = jnp.maximum(h2, 0.0)

    # Large N=D matmul: bf16 operands, f32 accumulation.
    y = jnp.dot(h2.astype(jnp.bfloat16), w4_ref[...],
                preferred_element_type=jnp.float32) + b4_ref[...]

    # sigmoid(y) = 1 / (1 + exp(-y)): exp on EUP, approx reciprocal on EUP.
    out_ref[...] = pl.reciprocal(1.0 + jnp.exp(-y), approx=True).astype(out_ref.dtype)


def autoencoder_forward(x, params, *, tb=None):
    """x: (B, D) bf16 (preferred; f32 also accepted but doubles input HBM traffic).
    params: (w1, b1, w2, b2, w3, b3, w4, b4); w1/w4 bf16, biases & small weights f32.
    Returns (B, D) bf16 reconstruction."""
    B, D = x.shape
    w1, b1, w2, b2, w3, b3, w4, b4 = params
    hidden_dim = w1.shape[1]
    output_dim = w2.shape[1]

    # Batch tile selection:
    #  - tiny batch: one full-array block (block dim == array dim is always legal)
    #  - otherwise: big tiles (amortize ~0.35us per-grid-step overhead, matters on
    #    v7x's 3.2 TB/s HBM) but at least 2 tiles so both v7x TCs get work;
    #    multiple of 16 for bf16 sublane packing, capped at 1024 rows.
    if tb is None:
        if B <= 16:
            tb = B
        else:
            tb = min(1024, _round_up(pl.cdiv(B, 2), 16))
    grid = (pl.cdiv(B, tb),)

    tile_map = lambda i: (i, 0)     # batch-tiled arrays (x / out)
    const_map = lambda i: (0, 0)    # VMEM-resident weights & biases (fetched once)

    def resident(a):
        return pl.BlockSpec(a.shape, const_map)

    out_dtype = jnp.bfloat16        # halve output writeback bytes (outputs live in [0,1])

    # Advisory cost estimate for the XLA scheduler.
    flops = 2 * B * (2 * D * hidden_dim + 2 * hidden_dim * output_dim)
    transcendentals = B * D  # exp for the sigmoid
    param_bytes = sum(int(p.size) * p.dtype.itemsize for p in params)
    bytes_accessed = int(B * D * (x.dtype.itemsize + jnp.dtype(out_dtype).itemsize)
                         + param_bytes)

    out = pl.pallas_call(
        autoencoder_kernel,
        grid=grid,
        out_shape=jax.ShapeDtypeStruct((B, D), out_dtype),
        in_specs=[
            pl.BlockSpec((tb, D), tile_map),
            resident(w1), resident(b1),
            resident(w2), resident(b2),
            resident(w3), resident(b3),
            resident(w4), resident(b4),
        ],
        out_specs=pl.BlockSpec((tb, D), tile_map),
        compiler_params=pltpu.CompilerParams(
            dimension_semantics=("parallel",),     # independent batch tiles
            vmem_limit_bytes=48 * 1024 * 1024,     # headroom for big tiles; < 64 MiB (v7x)
        ),
        cost_estimate=pl.CostEstimate(
            flops=int(flops),
            transcendentals=int(transcendentals),
            bytes_accessed=bytes_accessed,
        ),
    )(x, w1, b1, w2, b2, w3, b3, w4, b4)

    return out


def init_linear_params(key, in_features, out_features, w_dtype=jnp.float32):
    """Deterministic init mimicking nn.Linear (uniform +/- 1/sqrt(fan_in)).
    Weight stored as (in_features, out_features) = W_torch.T."""
    kw, kb = jax.random.split(key)
    bound = 1.0 / jnp.sqrt(jnp.float32(in_features))
    w = jax.random.uniform(kw, (in_features, out_features), jnp.float32,
                           minval=-bound, maxval=bound).astype(w_dtype)
    b = jax.random.uniform(kb, (1, out_features), jnp.float32,
                           minval=-bound, maxval=bound)
    return w, b


def make_params(key, in_channel, image_size, hidden_dim, output_dim):
    D = in_channel * image_size ** 2
    k1, k2, k3, k4 = jax.random.split(key, 4)
    # Large-D weights in bf16 (native MXU rate, fewer HBM bytes); tiny weights f32.
    w1, b1 = init_linear_params(k1, D, hidden_dim, w_dtype=jnp.bfloat16)   # encoder L1
    w2, b2 = init_linear_params(k2, hidden_dim, output_dim)                # encoder L2
    w3, b3 = init_linear_params(k3, output_dim, hidden_dim)                # decoder L1
    w4, b4 = init_linear_params(k4, hidden_dim, D, w_dtype=jnp.bfloat16)   # decoder L2
    return (w1, b1, w2, b2, w3, b3, w4, b4)


def reference_forward(x_bf16, params):
    """Pure-JAX reference with the same dtype handling as the kernel
    (bf16 operands + f32 accumulation for the two large matmuls, exact sigmoid)."""
    w1, b1, w2, b2, w3, b3, w4, b4 = params
    h1 = jnp.maximum(
        jnp.dot(x_bf16, w1, preferred_element_type=jnp.float32) + b1, 0.0)
    z = jnp.maximum(
        jnp.dot(h1, w2, preferred_element_type=jnp.float32) + b2, 0.0)
    h2 = jnp.maximum(
        jnp.dot(z, w3, preferred_element_type=jnp.float32) + b3, 0.0)
    y = jnp.dot(h2.astype(jnp.bfloat16), w4, preferred_element_type=jnp.float32) + b4
    return jax.nn.sigmoid(y)


if __name__ == "__main__":
    # Small shapes consistent with the module's forward.
    batch = 2
    in_channel = 4
    image_size = 16
    hidden_dim = 32
    output_dim = 16
    D = in_channel * image_size ** 2  # 1024

    key = jax.random.PRNGKey(0)
    k_x, k_p = jax.random.split(key)

    # NCHW image batch, flattened per-sample before the MLP (as nn.Linear expects).
    # The upstream producer supplies bf16 so the kernel's input read is half-width.
    x_img = jax.random.normal(k_x, (batch, in_channel, image_size, image_size),
                              jnp.float32)
    x = x_img.reshape(batch, D).astype(jnp.bfloat16)

    params = make_params(k_p, in_channel, image_size, hidden_dim, output_dim)

    out = autoencoder_forward(x, params)
    out = jax.block_until_ready(out)

    ref = reference_forward(x, params)
    assert out.shape == (batch, D), f"bad output shape {out.shape}"
    assert out.dtype == jnp.bfloat16, f"bad output dtype {out.dtype}"
    # Tolerance covers MXU-vs-XLA accumulation order, the approx EUP reciprocal
    # in the sigmoid, and the final bf16 cast; outputs live in [0, 1].
    assert jnp.allclose(out.astype(jnp.float32), ref, atol=1.5e-2, rtol=2e-2), \
        "mismatch vs JAX reference"

    print("KERNEL_OK")
</pallas_src>

<mosaic_0001>
module attributes {stable_mosaic.version = 11 : i64} {
  func.func @autoencoder_kernel(%arg0: i32, %arg1: memref<2x1024xbf16, #tpu.memory_space<vmem>>, %arg2: memref<1024x32xbf16, #tpu.memory_space<vmem>>, %arg3: memref<1x32xf32, #tpu.memory_space<vmem>>, %arg4: memref<32x16xf32, #tpu.memory_space<vmem>>, %arg5: memref<1x16xf32, #tpu.memory_space<vmem>>, %arg6: memref<16x32xf32, #tpu.memory_space<vmem>>, %arg7: memref<1x32xf32, #tpu.memory_space<vmem>>, %arg8: memref<32x1024xbf16, #tpu.memory_space<vmem>>, %arg9: memref<1x1024xf32, #tpu.memory_space<vmem>>, %arg10: memref<2x1024xbf16, #tpu.memory_space<vmem>>) attributes {dimension_semantics = [#tpu.dimension_semantics<parallel>], iteration_bounds = array<i64: 1>, scalar_prefetch = 0 : i64, scratch_operands = 0 : i64, tpu.core_type = #tpu.core_type<tc>, window_params = [{transform_indices = @transform_0, window_bounds = array<i64: 2, 1024>}, {pipeline_mode = #tpu.pipeline_mode<synchronous>, transform_indices = @transform_1, window_bounds = array<i64: 1024, 32>}, {pipeline_mode = #tpu.pipeline_mode<synchronous>, transform_indices = @transform_2, window_bounds = array<i64: 1, 32>}, {pipeline_mode = #tpu.pipeline_mode<synchronous>, transform_indices = @transform_3, window_bounds = array<i64: 32, 16>}, {pipeline_mode = #tpu.pipeline_mode<synchronous>, transform_indices = @transform_4, window_bounds = array<i64: 1, 16>}, {pipeline_mode = #tpu.pipeline_mode<synchronous>, transform_indices = @transform_5, window_bounds = array<i64: 16, 32>}, {pipeline_mode = #tpu.pipeline_mode<synchronous>, transform_indices = @transform_6, window_bounds = array<i64: 1, 32>}, {pipeline_mode = #tpu.pipeline_mode<synchronous>, transform_indices = @transform_7, window_bounds = array<i64: 32, 1024>}, {pipeline_mode = #tpu.pipeline_mode<synchronous>, transform_indices = @transform_8, window_bounds = array<i64: 1, 1024>}, {transform_indices = @transform_9, window_bounds = array<i64: 2, 1024>}]} {
    %c0 = arith.constant 0 : index
    %c0_0 = arith.constant 0 : index
    %0 = vector.load %arg1[%c0, %c0_0] : memref<2x1024xbf16, #tpu.memory_space<vmem>>, vector<2x1024xbf16>
    %c0_1 = arith.constant 0 : index
    %c0_2 = arith.constant 0 : index
    %1 = vector.load %arg2[%c0_1, %c0_2] : memref<1024x32xbf16, #tpu.memory_space<vmem>>, vector<1024x32xbf16>
    %cst = arith.constant dense<0.000000e+00> : vector<2x32xf32>
    %2 = tpu.matmul %0, %1, %cst {dimension_numbers = #tpu.dot_dimension_numbers<[1], [0], [0], [1], [0, 0, 1, 1], [], []>} : vector<2x1024xbf16>, vector<1024x32xbf16>, vector<2x32xf32> -> vector<2x32xf32>
    %c0_3 = arith.constant 0 : index
    %c0_4 = arith.constant 0 : index
    %3 = vector.load %arg3[%c0_3, %c0_4] : memref<1x32xf32, #tpu.memory_space<vmem>>, vector<1x32xf32>
    %4 = vector.broadcast %3 : vector<1x32xf32> to vector<2x32xf32>
    %5 = arith.addf %2, %4 : vector<2x32xf32>
    %cst_5 = arith.constant 0.000000e+00 : f32
    %6 = vector.broadcast %cst_5 : f32 to vector<2x32xf32>
    %7 = arith.maximumf %5, %6 : vector<2x32xf32>
    %c0_6 = arith.constant 0 : index
    %c0_7 = arith.constant 0 : index
    %8 = vector.load %arg4[%c0_6, %c0_7] : memref<32x16xf32, #tpu.memory_space<vmem>>, vector<32x16xf32>
    %cst_8 = arith.constant dense<0.000000e+00> : vector<2x16xf32>
    %9 = tpu.matmul %7, %8, %cst_8 {dimension_numbers = #tpu.dot_dimension_numbers<[1], [0], [0], [1], [0, 0, 1, 1], [], []>} : vector<2x32xf32>, vector<32x16xf32>, vector<2x16xf32> -> vector<2x16xf32>
    %c0_9 = arith.constant 0 : index
    %c0_10 = arith.constant 0 : index
    %10 = vector.load %arg5[%c0_9, %c0_10] : memref<1x16xf32, #tpu.memory_space<vmem>>, vector<1x16xf32>
    %11 = vector.broadcast %10 : vector<1x16xf32> to vector<2x16xf32>
    %12 = arith.addf %9, %11 : vector<2x16xf32>
    %cst_11 = arith.constant 0.000000e+00 : f32
    %13 = vector.broadcast %cst_11 : f32 to vector<2x16xf32>
    %14 = arith.maximumf %12, %13 : vector<2x16xf32>
    %c0_12 = arith.constant 0 : index
    %c0_13 = arith.constant 0 : index
    %15 = vector.load %arg6[%c0_12, %c0_13] : memref<16x32xf32, #tpu.memory_space<vmem>>, vector<16x32xf32>
    %cst_14 = arith.constant dense<0.000000e+00> : vector<2x32xf32>
    %16 = tpu.matmul %14, %15, %cst_14 {dimension_numbers = #tpu.dot_dimension_numbers<[1], [0], [0], [1], [0, 0, 1, 1], [], []>} : vector<2x16xf32>, vector<16x32xf32>, vector<2x32xf32> -> vector<2x32xf32>
    %c0_15 = arith.constant 0 : index
    %c0_16 = arith.constant 0 : index
    %17 = vector.load %arg7[%c0_15, %c0_16] : memref<1x32xf32, #tpu.memory_space<vmem>>, vector<1x32xf32>
    %18 = vector.broadcast %17 : vector<1x32xf32> to vector<2x32xf32>
    %19 = arith.addf %16, %18 : vector<2x32xf32>
    %cst_17 = arith.constant 0.000000e+00 : f32
    %20 = vector.broadcast %cst_17 : f32 to vector<2x32xf32>
    %21 = arith.maximumf %19, %20 : vector<2x32xf32>
    %22 = arith.truncf %21 : vector<2x32xf32> to vector<2x32xbf16>
    %c0_18 = arith.constant 0 : index
    %c0_19 = arith.constant 0 : index
    %23 = vector.load %arg8[%c0_18, %c0_19] : memref<32x1024xbf16, #tpu.memory_space<vmem>>, vector<32x1024xbf16>
    %cst_20 = arith.constant dense<0.000000e+00> : vector<2x1024xf32>
    %24 = tpu.matmul %22, %23, %cst_20 {dimension_numbers = #tpu.dot_dimension_numbers<[1], [0], [0], [1], [0, 0, 1, 1], [], []>} : vector<2x32xbf16>, vector<32x1024xbf16>, vector<2x1024xf32> -> vector<2x1024xf32>
    %c0_21 = arith.constant 0 : index
    %c0_22 = arith.constant 0 : index
    %25 = vector.load %arg9[%c0_21, %c0_22] : memref<1x1024xf32, #tpu.memory_space<vmem>>, vector<1x1024xf32>
    %26 = vector.broadcast %25 : vector<1x1024xf32> to vector<2x1024xf32>
    %27 = arith.addf %24, %26 : vector<2x1024xf32>
    %cst_23 = arith.constant 0.000000e+00 : f32
    %28 = vector.broadcast %cst_23 : f32 to vector<2x1024xf32>
    %29 = arith.subf %28, %27 : vector<2x1024xf32>
    %30 = math.exp %29 : vector<2x1024xf32>
    %cst_24 = arith.constant 1.000000e+00 : f32
    %31 = vector.broadcast %cst_24 : f32 to vector<2x1024xf32>
    %32 = arith.addf %31, %30 : vector<2x1024xf32>
    %33 = tpu.reciprocal %32 {approx = true} : vector<2x1024xf32> -> vector<2x1024xf32>
    %34 = arith.truncf %33 : vector<2x1024xf32> to vector<2x1024xbf16>
    %c0_25 = arith.constant 0 : index
    %c0_26 = arith.constant 0 : index
    %35 = vector.load %arg10[%c0_25, %c0_26] : memref<2x1024xbf16, #tpu.memory_space<vmem>>, vector<2x1024xbf16>
    tpu.vector_store %arg10[%c0_25, %c0_26], %34 {strides = array<i32>} : memref<2x1024xbf16, #tpu.memory_space<vmem>>, vector<2x1024xbf16>,
    return
  }
  func.func @transform_0(%arg0: i32) -> (i32, i32) {
    %c0_i32 = arith.constant 0 : i32
    %c0_i32_0 = arith.constant 0 : i32
    return %arg0, %c0_i32 : i32, i32
  }
  func.func @transform_1(%arg0: i32) -> (i32, i32) {
    %c0_i32 = arith.constant 0 : i32
    %c0_i32_0 = arith.constant 0 : i32
    %c0_i32_1 = arith.constant 0 : i32
    return %c0_i32, %c0_i32_0 : i32, i32
  }
  func.func @transform_2(%arg0: i32) -> (i32, i32) {
    %c0_i32 = arith.constant 0 : i32
    %c0_i32_0 = arith.constant 0 : i32
    %c0_i32_1 = arith.constant 0 : i32
    return %c0_i32, %c0_i32_0 : i32, i32
  }
  func.func @transform_3(%arg0: i32) -> (i32, i32) {
    %c0_i32 = arith.constant 0 : i32
    %c0_i32_0 = arith.constant 0 : i32
    %c0_i32_1 = arith.constant 0 : i32
    return %c0_i32, %c0_i32_0 : i32, i32
  }
  func.func @transform_4(%arg0: i32) -> (i32, i32) {
    %c0_i32 = arith.constant 0 : i32
    %c0_i32_0 = arith.constant 0 : i32
    %c0_i32_1 = arith.constant 0 : i32
    return %c0_i32, %c0_i32_0 : i32, i32
  }
  func.func @transform_5(%arg0: i32) -> (i32, i32) {
    %c0_i32 = arith.constant 0 : i32
    %c0_i32_0 = arith.constant 0 : i32
    %c0_i32_1 = arith.constant 0 : i32
    return %c0_i32, %c0_i32_0 : i32, i32
  }
  func.func @transform_6(%arg0: i32) -> (i32, i32) {
    %c0_i32 = arith.constant 0 : i32
    %c0_i32_0 = arith.constant 0 : i32
    %c0_i32_1 = arith.constant 0 : i32
    return %c0_i32, %c0_i32_0 : i32, i32
  }
  func.func @transform_7(%arg0: i32) -> (i32, i32) {
    %c0_i32 = arith.constant 0 : i32
    %c0_i32_0 = arith.constant 0 : i32
    %c0_i32_1 = arith.constant 0 : i32
    return %c0_i32, %c0_i32_0 : i32, i32
  }
  func.func @transform_8(%arg0: i32) -> (i32, i32) {
    %c0_i32 = arith.constant 0 : i32
    %c0_i32_0 = arith.constant 0 : i32
    %c0_i32_1 = arith.constant 0 : i32
    return %c0_i32, %c0_i32_0 : i32, i32
  }
  func.func @transform_9(%arg0: i32) -> (i32, i32) {
    %c0_i32 = arith.constant 0 : i32
    %c0_i32_0 = arith.constant 0 : i32
    return %arg0, %c0_i32 : i32, i32
  }
}

</mosaic_0001>

<llo_original>
// kernel: tpu_custom_call.1
$region0: #{tpu_custom_call.1}
  #allocation0 [shape = 'u32[]', space=smem, size = 0x4, offset = 0x4, fixed_abs, tag = 'smem constant byte address 0x4 - core index']
  #allocation1 [shape = 'u32[144,128]{1,0:T(1,128)}', space=vmem, size = 0x12000, scoped, tag = 'internal scratch']
  %s0 = inlined_call_operand.vmem [shape: bf16[2,1024], index: 0, kind: input, shape index: {}]
  %s1 = inlined_call_operand.vmem [shape: bf16[1024,32], index: 1, kind: input, shape index: {}]
  %s2 = inlined_call_operand.vmem [shape: f32[1,32], index: 2, kind: input, shape index: {}]
  %s3 = inlined_call_operand.vmem [shape: f32[32,16], index: 3, kind: input, shape index: {}]
  %s4 = inlined_call_operand.vmem [shape: f32[1,16], index: 4, kind: input, shape index: {}]
  %s5 = inlined_call_operand.vmem [shape: f32[16,32], index: 5, kind: input, shape index: {}]
  %s6 = inlined_call_operand.vmem [shape: f32[1,32], index: 6, kind: input, shape index: {}]
  %s7 = inlined_call_operand.vmem [shape: bf16[32,1024], index: 7, kind: input, shape index: {}]
  %s8 = inlined_call_operand.vmem [shape: f32[1,1024], index: 8, kind: input, shape index: {}]
  %s9 = inlined_call_operand.hbm [shape: bf16[2,1024], index: 9, kind: output, shape index: {}]
  %s10 = sld [smem:[#allocation0]]
  $region46: #{tpu_custom_call.1} parent=0
    _
  %s12 = ssub.s32 1, %s10
  %s13 = scalar_select 0, %s12, %s10
  $region1: #{tpu_custom_call.1} parent=0
    #allocation2 [shape = 'u8[4096]{0}', space=vmem, size = 0x1000, scoped, tag = 'output window, operand 0, single buffered']
    #allocation3 [shape = 's32[1]{0}', space=sflag, size = 0x4, scoped, tag = 'scoped memory for tpu_custom_call.1']
    %14 = vsyncpa [#allocation3], 0
    // Predicated region
    $region2: #{tpu_custom_call.1} parent=1 // pred_check
      _
    $region3: #{tpu_custom_call.1} parent=1 // pred_check_branch
      %16 = sbr.rel (0) target = $region5
    $region4: #{tpu_custom_call.1} parent=1 // pred_region
      _
    $region5: #{tpu_custom_call.1} parent=1 // pred_fallthru
      _
    // Predicated region
    $region6: #{tpu_custom_call.1} parent=1 // pred_check
      _
    $region7: #{tpu_custom_call.1} parent=1 // pred_check_branch
      %18 = sbr.rel (0) target = $region9
    $region8: #{tpu_custom_call.1} parent=1 // pred_region
      _
    $region9: #{tpu_custom_call.1} parent=1 // pred_fallthru
      _
    // Predicated region
    $region10: #{tpu_custom_call.1} parent=1 // pred_check
      _
    $region11: #{tpu_custom_call.1} parent=1 // pred_check_branch
      %20 = sbr.rel (0) target = $region13
    $region12: #{tpu_custom_call.1} parent=1 // pred_region
      _
    $region13: #{tpu_custom_call.1} parent=1 // pred_fallthru
      _
    // Predicated region
    $region14: #{tpu_custom_call.1} parent=1 // pred_check
      _
    $region15: #{tpu_custom_call.1} parent=1 // pred_check_branch
      %22 = sbr.rel (0) target = $region17
    $region16: #{tpu_custom_call.1} parent=1 // pred_region
      _
    $region17: #{tpu_custom_call.1} parent=1 // pred_fallthru
      _
    // Predicated region
    $region18: #{tpu_custom_call.1} parent=1 // pred_check
      _
    $region19: #{tpu_custom_call.1} parent=1 // pred_check_branch
      %24 = sbr.rel (0) target = $region21
    $region20: #{tpu_custom_call.1} parent=1 // pred_region
      _
    $region21: #{tpu_custom_call.1} parent=1 // pred_fallthru
      _
    // Predicated region
    $region22: #{tpu_custom_call.1} parent=1 // pred_check
      _
    $region23: #{tpu_custom_call.1} parent=1 // pred_check_branch
      %26 = sbr.rel (0) target = $region25
    $region24: #{tpu_custom_call.1} parent=1 // pred_region
      _
    $region25: #{tpu_custom_call.1} parent=1 // pred_fallthru
      _
    // Predicated region
    $region26: #{tpu_custom_call.1} parent=1 // pred_check
      _
    $region27: #{tpu_custom_call.1} parent=1 // pred_check_branch
      %28 = sbr.rel (0) target = $region29
    $region28: #{tpu_custom_call.1} parent=1 // pred_region
      _
    $region29: #{tpu_custom_call.1} parent=1 // pred_fallthru
      _
    // Predicated region
    $region30: #{tpu_custom_call.1} parent=1 // pred_check
      _
    $region31: #{tpu_custom_call.1} parent=1 // pred_check_branch
      %30 = sbr.rel (0) target = $region33
    $region32: #{tpu_custom_call.1} parent=1 // pred_region
      _
    $region33: #{tpu_custom_call.1} parent=1 // pred_fallthru
      _
    // Predicated region
    $region34: #{tpu_custom_call.1} parent=1 // pred_check
      _
    $region35: #{tpu_custom_call.1} parent=1 // pred_check_branch
      %32 = sbr.rel (0) target = $region37
    $region36: #{tpu_custom_call.1} parent=1 // pred_region
      _
    $region37: #{tpu_custom_call.1} parent=1 // pred_fallthru
      _
    %v34 = vld [vmem:[%s0] sm:$0xff]
    %v35 = vld [vmem:[%s1] sm:$0xf]
    %v36 = vld [vmem:[%s1 + $0x4] sm:$0xf]
    %v37 = vld [vmem:[%s1 + $0x8] sm:$0xf]
    %v38 = vld [vmem:[%s1 + $0xc] sm:$0xf]
    %v39 = vld [vmem:[%s1 + $0x10] sm:$0xf]
    %v40 = vld [vmem:[%s1 + $0x14] sm:$0xf]
    %v41 = vld [vmem:[%s1 + $0x18] sm:$0xf]
    %v42 = vld [vmem:[%s1 + $0x1c] sm:$0xf]
    %v43 = vld [vmem:[%s1 + $0x20] sm:$0xf]
    %v44 = vld [vmem:[%s1 + $0x24] sm:$0xf]
    %v45 = vld [vmem:[%s1 + $0x28] sm:$0xf]
    %v46 = vld [vmem:[%s1 + $0x2c] sm:$0xf]
    %v47 = vld [vmem:[%s1 + $0x30] sm:$0xf]
    %v48 = vld [vmem:[%s1 + $0x34] sm:$0xf]
    %v49 = vld [vmem:[%s1 + $0x38] sm:$0xf]
    %v50 = vld [vmem:[%s1 + $0x3c] sm:$0xf]
    %v51 = vld [vmem:[%s1 + $0x40] sm:$0xf]
    %v52 = vld [vmem:[%s1 + $0x44] sm:$0xf]
    %v53 = vld [vmem:[%s1 + $0x48] sm:$0xf]
    %v54 = vld [vmem:[%s1 + $0x4c] sm:$0xf]
    %v55 = vld [vmem:[%s1 + $0x50] sm:$0xf]
    %v56 = vld [vmem:[%s1 + $0x54] sm:$0xf]
    %v57 = vld [vmem:[%s1 + $0x58] sm:$0xf]
    %v58 = vld [vmem:[%s1 + $0x5c] sm:$0xf]
    %v59 = vld [vmem:[%s1 + $0x60] sm:$0xf]
    %v60 = vld [vmem:[%s1 + $0x64] sm:$0xf]
    %v61 = vld [vmem:[%s1 + $0x68] sm:$0xf]
    %v62 = vld [vmem:[%s1 + $0x6c] sm:$0xf]
    %v63 = vld [vmem:[%s1 + $0x70] sm:$0xf]
    %v64 = vld [vmem:[%s1 + $0x74] sm:$0xf]
    %v65 = vld [vmem:[%s1 + $0x78] sm:$0xf]
    %v66 = vld [vmem:[%s1 + $0x7c] sm:$0xf]
    %v67 = vld [vmem:[%s1 + $0x80] sm:$0xf]
    %v68 = vld [vmem:[%s1 + $0x84] sm:$0xf]
    %v69 = vld [vmem:[%s1 + $0x88] sm:$0xf]
    %v70 = vld [vmem:[%s1 + $0x8c] sm:$0xf]
    %v71 = vld [vmem:[%s1 + $0x90] sm:$0xf]
    %v72 = vld [vmem:[%s1 + $0x94] sm:$0xf]
    %v73 = vld [vmem:[%s1 + $0x98] sm:$0xf]
    %v74 = vld [vmem:[%s1 + $0x9c] sm:$0xf]
    %v75 = vld [vmem:[%s1 + $0xa0] sm:$0xf]
    %v76 = vld [vmem:[%s1 + $0xa4] sm:$0xf]
    %v77 = vld [vmem:[%s1 + $0xa8] sm:$0xf]
    %v78 = vld [vmem:[%s1 + $0xac] sm:$0xf]
    %v79 = vld [vmem:[%s1 + $0xb0] sm:$0xf]
    %v80 = vld [vmem:[%s1 + $0xb4] sm:$0xf]
    %v81 = vld [vmem:[%s1 + $0xb8] sm:$0xf]
    %v82 = vld [vmem:[%s1 + $0xbc] sm:$0xf]
    %v83 = vld [vmem:[%s1 + $0xc0] sm:$0xf]
    %v84 = vld [vmem:[%s1 + $0xc4] sm:$0xf]
    %v85 = vld [vmem:[%s1 + $0xc8] sm:$0xf]
    %v86 = vld [vmem:[%s1 + $0xcc] sm:$0xf]
    %v87 = vld [vmem:[%s1 + $0xd0] sm:$0xf]
    %v88 = vld [vmem:[%s1 + $0xd4] sm:$0xf]
    %v89 = vld [vmem:[%s1 + $0xd8] sm:$0xf]
    %v90 = vld [vmem:[%s1 + $0xdc] sm:$0xf]
    %v91 = vld [vmem:[%s1 + $0xe0] sm:$0xf]
    %v92 = vld [vmem:[%s1 + $0xe4] sm:$0xf]
    %v93 = vld [vmem:[%s1 + $0xe8] sm:$0xf]
    %v94 = vld [vmem:[%s1 + $0xec] sm:$0xf]
    %v95 = vld [vmem:[%s1 + $0xf0] sm:$0xf]
    %v96 = vld [vmem:[%s1 + $0xf4] sm:$0xf]
    %v97 = vld [vmem:[%s1 + $0xf8] sm:$0xf]
    %v98 = vld [vmem:[%s1 + $0xfc] sm:$0xf]
    %v99 = vld [vmem:[%s1 + $0x100] sm:$0xf]
    %v100 = vld [vmem:[%s1 + $0x104] sm:$0xf]
    %v101 = vld [vmem:[%s1 + $0x108] sm:$0xf]
    %v102 = vld [vmem:[%s1 + $0x10c] sm:$0xf]
    %v103 = vld [vmem:[%s1 + $0x110] sm:$0xf]
    %v104 = vld [vmem:[%s1 + $0x114] sm:$0xf]
    %v105 = vld [vmem:[%s1 + $0x118] sm:$0xf]
    %v106 = vld [vmem:[%s1 + $0x11c] sm:$0xf]
    %v107 = vld [vmem:[%s1 + $0x120] sm:$0xf]
    %v108 = vld [vmem:[%s1 + $0x124] sm:$0xf]
    %v109 = vld [vmem:[%s1 + $0x128] sm:$0xf]
    %v110 = vld [vmem:[%s1 + $0x12c] sm:$0xf]
    %v111 = vld [vmem:[%s1 + $0x130] sm:$0xf]
    %v112 = vld [vmem:[%s1 + $0x134] sm:$0xf]
    %v113 = vld [vmem:[%s1 + $0x138] sm:$0xf]
    %v114 = vld [vmem:[%s1 + $0x13c] sm:$0xf]
    %v115 = vld [vmem:[%s1 + $0x140] sm:$0xf]
    %v116 = vld [vmem:[%s1 + $0x144] sm:$0xf]
    %v117 = vld [vmem:[%s1 + $0x148] sm:$0xf]
    %v118 = vld [vmem:[%s1 + $0x14c] sm:$0xf]
    %v119 = vld [vmem:[%s1 + $0x150] sm:$0xf]
    %v120 = vld [vmem:[%s1 + $0x154] sm:$0xf]
    %v121 = vld [vmem:[%s1 + $0x158] sm:$0xf]
    %v122 = vld [vmem:[%s1 + $0x15c] sm:$0xf]
    %v123 = vld [vmem:[%s1 + $0x160] sm:$0xf]
    %v124 = vld [vmem:[%s1 + $0x164] sm:$0xf]
    %v125 = vld [vmem:[%s1 + $0x168] sm:$0xf]
    %v126 = vld [vmem:[%s1 + $0x16c] sm:$0xf]
    %v127 = vld [vmem:[%s1 + $0x170] sm:$0xf]
    %v128 = vld [vmem:[%s1 + $0x174] sm:$0xf]
    %v129 = vld [vmem:[%s1 + $0x178] sm:$0xf]
    %v130 = vld [vmem:[%s1 + $0x17c] sm:$0xf]
    %v131 = vld [vmem:[%s1 + $0x180] sm:$0xf]
    %v132 = vld [vmem:[%s1 + $0x184] sm:$0xf]
    %v133 = vld [vmem:[%s1 + $0x188] sm:$0xf]
    %v134 = vld [vmem:[%s1 + $0x18c] sm:$0xf]
    %v135 = vld [vmem:[%s1 + $0x190] sm:$0xf]
    %v136 = vld [vmem:[%s1 + $0x194] sm:$0xf]
    %v137 = vld [vmem:[%s1 + $0x198] sm:$0xf]
    %v138 = vld [vmem:[%s1 + $0x19c] sm:$0xf]
    %v139 = vld [vmem:[%s1 + $0x1a0] sm:$0xf]
    %v140 = vld [vmem:[%s1 + $0x1a4] sm:$0xf]
    %v141 = vld [vmem:[%s1 + $0x1a8] sm:$0xf]
    %v142 = vld [vmem:[%s1 + $0x1ac] sm:$0xf]
    %v143 = vld [vmem:[%s1 + $0x1b0] sm:$0xf]
    %v144 = vld [vmem:[%s1 + $0x1b4] sm:$0xf]
    %v145 = vld [vmem:[%s1 + $0x1b8] sm:$0xf]
    %v146 = vld [vmem:[%s1 + $0x1bc] sm:$0xf]
    %v147 = vld [vmem:[%s1 + $0x1c0] sm:$0xf]
    %v148 = vld [vmem:[%s1 + $0x1c4] sm:$0xf]
    %v149 = vld [vmem:[%s1 + $0x1c8] sm:$0xf]
    %v150 = vld [vmem:[%s1 + $0x1cc] sm:$0xf]
    %v151 = vld [vmem:[%s1 + $0x1d0] sm:$0xf]
    %v152 = vld [vmem:[%s1 + $0x1d4] sm:$0xf]
    %v153 = vld [vmem:[%s1 + $0x1d8] sm:$0xf]
    %v154 = vld [vmem:[%s1 + $0x1dc] sm:$0xf]
    %v155 = vld [vmem:[%s1 + $0x1e0] sm:$0xf]
    %v156 = vld [vmem:[%s1 + $0x1e4] sm:$0xf]
    %v157 = vld [vmem:[%s1 + $0x1e8] sm:$0xf]
    %v158 = vld [vmem:[%s1 + $0x1ec] sm:$0xf]
    %v159 = vld [vmem:[%s1 + $0x1f0] sm:$0xf]
    %v160 = vld [vmem:[%s1 + $0x1f4] sm:$0xf]
    %v161 = vld [vmem:[%s1 + $0x1f8] sm:$0xf]
    %v162 = vld [vmem:[%s1 + $0x1fc] sm:$0xf]
    %v163 = vld [vmem:[%s2] sm:$0x1]
    %v165 = vlaneseq
    %v166 = vshrl.u32 %v165, 7
    %v167 = vsub.s32 0, %v166
    %v168 = vrot.slane %v163, %v167
    %v171 = vcombine.high %v34, %v34
    %v173 = vunpack.c.l.s4 1966171168
    %v174 = vunpack.c.0.s8 %v173
    %v175 = vlaneseq
    %v176 = vshrl.u32 %v175, 7
    %v177 = vsub.s32 %v174, %v176
    %v178 = vrot.slane %v34, %v177
    %v180 = vunpack.c.l.s4 1966171168
    %v181 = vunpack.c.0.s8 %v180
    %v182 = vlaneseq
    %v183 = vshrl.u32 %v182, 7
    %v184 = vsub.s32 %v181, %v183
    %v185 = vrot.slane %v171, %v184
    %v186 = vcombine.high %v178, %v178
    %v187 = vcombine.high %v185, %v185
    %v189 = vunpack.c.l.s4 1966171168
    %v190 = vunpack.c.0.s8 %v189
    %v191 = vlaneseq
    %v192 = vshrl.u32 %v191, 7
    %v193 = vsub.s32 %v190, %v192
    %v194 = vrot.slane %v178, %v193
    %v196 = vunpack.c.l.s4 1966171168
    %v197 = vunpack.c.0.s8 %v196
    %v198 = vlaneseq
    %v199 = vshrl.u32 %v198, 7
    %v200 = vsub.s32 %v197, %v199
    %v201 = vrot.slane %v185, %v200
    %v203 = vunpack.c.l.s4 1966171168
    %v204 = vunpack.c.0.s8 %v203
    %v205 = vlaneseq
    %v206 = vshrl.u32 %v205, 7
    %v207 = vsub.s32 %v204, %v206
    %v208 = vrot.slane %v186, %v207
    %v210 = vunpack.c.l.s4 1966171168
    %v211 = vunpack.c.0.s8 %v210
    %v212 = vlaneseq
    %v213 = vshrl.u32 %v212, 7
    %v214 = vsub.s32 %v211, %v213
    %v215 = vrot.slane %v187, %v214
    %v216 = vcombine.high %v194, %v194
    %v217 = vcombine.high %v201, %v201
    %v218 = vcombine.high %v208, %v208
    %v219 = vcombine.high %v215, %v215
    %v356 = vunpack.c.l.b16 %v35
    %v357 = vunpack.c.l.b16 %v36
    %v358 = vunpack.c.l.b16 %v37
    %v359 = vunpack.c.l.b16 %v38
    %v360 = vunpack.c.l.b16 %v39
    %v361 = vunpack.c.l.b16 %v40
    %v362 = vunpack.c.l.b16 %v41
    %v363 = vunpack.c.l.b16 %v42
    %v364 = vunpack.c.l.b16 %v43
    %v365 = vunpack.c.l.b16 %v44
    %v366 = vunpack.c.l.b16 %v45
    %v367 = vunpack.c.l.b16 %v46
    %v368 = vunpack.c.l.b16 %v47
    %v369 = vunpack.c.l.b16 %v48
    %v370 = vunpack.c.l.b16 %v49
    %v371 = vunpack.c.l.b16 %v50
    %v372 = vunpack.c.l.b16 %v51
    %v373 = vunpack.c.l.b16 %v52
    %v374 = vunpack.c.l.b16 %v53
    %v375 = vunpack.c.l.b16 %v54
    %v376 = vunpack.c.l.b16 %v55
    %v377 = vunpack.c.l.b16 %v56
    %v378 = vunpack.c.l.b16 %v57
    %v379 = vunpack.c.l.b16 %v58
    %v380 = vunpack.c.l.b16 %v59
    %v381 = vunpack.c.l.b16 %v60
    %v382 = vunpack.c.l.b16 %v61
    %v383 = vunpack.c.l.b16 %v62
    %v384 = vunpack.c.l.b16 %v63
    %v385 = vunpack.c.l.b16 %v64
    %v386 = vunpack.c.l.b16 %v65
    %v387 = vunpack.c.l.b16 %v66
    %v388 = vunpack.c.l.b16 %v67
    %v389 = vunpack.c.l.b16 %v68
    %v390 = vunpack.c.l.b16 %v69
    %v391 = vunpack.c.l.b16 %v70
    %v392 = vunpack.c.l.b16 %v71
    %v393 = vunpack.c.l.b16 %v72
    %v394 = vunpack.c.l.b16 %v73
    %v395 = vunpack.c.l.b16 %v74
    %v396 = vunpack.c.l.b16 %v75
    %v397 = vunpack.c.l.b16 %v76
    %v398 = vunpack.c.l.b16 %v77
    %v399 = vunpack.c.l.b16 %v78
    %v400 = vunpack.c.l.b16 %v79
    %v401 = vunpack.c.l.b16 %v80
    %v402 = vunpack.c.l.b16 %v81
    %v403 = vunpack.c.l.b16 %v82
    %v404 = vunpack.c.l.b16 %v83
    %v405 = vunpack.c.l.b16 %v84
    %v406 = vunpack.c.l.b16 %v85
    %v407 = vunpack.c.l.b16 %v86
    %v408 = vunpack.c.l.b16 %v87
    %v409 = vunpack.c.l.b16 %v88
    %v410 = vunpack.c.l.b16 %v89
    %v411 = vunpack.c.l.b16 %v90
    %v412 = vunpack.c.l.b16 %v91
    %v413 = vunpack.c.l.b16 %v92
    %v414 = vunpack.c.l.b16 %v93
    %v415 = vunpack.c.l.b16 %v94
    %v416 = vunpack.c.l.b16 %v95
    %v417 = vunpack.c.l.b16 %v96
    %v418 = vunpack.c.l.b16 %v97
    %v419 = vunpack.c.l.b16 %v98
    %v420 = vunpack.c.l.b16 %v99
    %v421 = vunpack.c.l.b16 %v100
    %v422 = vunpack.c.l.b16 %v101
    %v423 = vunpack.c.l.b16 %v102
    %v424 = vunpack.c.l.b16 %v103
    %v425 = vunpack.c.l.b16 %v104
    %v426 = vunpack.c.l.b16 %v105
    %v427 = vunpack.c.l.b16 %v106
    %v428 = vunpack.c.l.b16 %v107
    %v429 = vunpack.c.l.b16 %v108
    %v430 = vunpack.c.l.b16 %v109
    %v431 = vunpack.c.l.b16 %v110
    %v432 = vunpack.c.l.b16 %v111
    %v433 = vunpack.c.l.b16 %v112
    %v434 = vunpack.c.l.b16 %v113
    %v435 = vunpack.c.l.b16 %v114
    %v436 = vunpack.c.l.b16 %v115
    %v437 = vunpack.c.l.b16 %v116
    %v438 = vunpack.c.l.b16 %v117
    %v439 = vunpack.c.l.b16 %v118
    %v440 = vunpack.c.l.b16 %v119
    %v441 = vunpack.c.l.b16 %v120
    %v442 = vunpack.c.l.b16 %v121
    %v443 = vunpack.c.l.b16 %v122
    %v444 = vunpack.c.l.b16 %v123
    %v445 = vunpack.c.l.b16 %v124
    %v446 = vunpack.c.l.b16 %v125
    %v447 = vunpack.c.l.b16 %v126
    %v448 = vunpack.c.l.b16 %v127
    %v449 = vunpack.c.l.b16 %v128
    %v450 = vunpack.c.l.b16 %v129
    %v451 = vunpack.c.l.b16 %v130
    %v452 = vunpack.c.l.b16 %v131
    %v453 = vunpack.c.l.b16 %v132
    %v454 = vunpack.c.l.b16 %v133
    %v455 = vunpack.c.l.b16 %v134
    %v456 = vunpack.c.l.b16 %v135
    %v457 = vunpack.c.l.b16 %v136
    %v458 = vunpack.c.l.b16 %v137
    %v459 = vunpack.c.l.b16 %v138
    %v460 = vunpack.c.l.b16 %v139
    %v461 = vunpack.c.l.b16 %v140
    %v462 = vunpack.c.l.b16 %v141
    %v463 = vunpack.c.l.b16 %v142
    %v464 = vunpack.c.l.b16 %v143
    %v465 = vunpack.c.l.b16 %v144
    %v466 = vunpack.c.l.b16 %v145
    %v467 = vunpack.c.l.b16 %v146
    %v468 = vunpack.c.l.b16 %v147
    %v469 = vunpack.c.l.b16 %v148
    %v470 = vunpack.c.l.b16 %v149
    %v471 = vunpack.c.l.b16 %v150
    %v472 = vunpack.c.l.b16 %v151
    %v473 = vunpack.c.l.b16 %v152
    %v474 = vunpack.c.l.b16 %v153
    %v475 = vunpack.c.l.b16 %v154
    %v476 = vunpack.c.l.b16 %v155
    %v477 = vunpack.c.l.b16 %v156
    %v478 = vunpack.c.l.b16 %v157
    %v479 = vunpack.c.l.b16 %v158
    %v480 = vunpack.c.l.b16 %v159
    %v481 = vunpack.c.l.b16 %v160
    %v482 = vunpack.c.l.b16 %v161
    %v483 = vunpack.c.l.b16 %v162
    %v484 = vpack.c.b16 %v357, %v356
    %v485 = vpack.c.b16 %v359, %v358
    %v486 = vpack.c.b16 %v361, %v360
    %v487 = vpack.c.b16 %v363, %v362
    %v488 = vpack.c.b16 %v365, %v364
    %v489 = vpack.c.b16 %v367, %v366
    %v490 = vpack.c.b16 %v369, %v368
    %v491 = vpack.c.b16 %v371, %v370
    %v492 = vpack.c.b16 %v373, %v372
    %v493 = vpack.c.b16 %v375, %v374
    %v494 = vpack.c.b16 %v377, %v376
    %v495 = vpack.c.b16 %v379, %v378
    %v496 = vpack.c.b16 %v381, %v380
    %v497 = vpack.c.b16 %v383, %v382
    %v498 = vpack.c.b16 %v385, %v384
    %v499 = vpack.c.b16 %v387, %v386
    %v500 = vpack.c.b16 %v389, %v388
    %v501 = vpack.c.b16 %v391, %v390
    %v502 = vpack.c.b16 %v393, %v392
    %v503 = vpack.c.b16 %v395, %v394
    %v504 = vpack.c.b16 %v397, %v396
    %v505 = vpack.c.b16 %v399, %v398
    %v506 = vpack.c.b16 %v401, %v400
    %v507 = vpack.c.b16 %v403, %v402
    %v508 = vpack.c.b16 %v405, %v404
    %v509 = vpack.c.b16 %v407, %v406
    %v510 = vpack.c.b16 %v409, %v408
    %v511 = vpack.c.b16 %v411, %v410
    %v512 = vpack.c.b16 %v413, %v412
    %v513 = vpack.c.b16 %v415, %v414
    %v514 = vpack.c.b16 %v417, %v416
    %v515 = vpack.c.b16 %v419, %v418
    %v516 = vpack.c.b16 %v421, %v420
    %v517 = vpack.c.b16 %v423, %v422
    %v518 = vpack.c.b16 %v425, %v424
    %v519 = vpack.c.b16 %v427, %v426
    %v520 = vpack.c.b16 %v429, %v428
    %v521 = vpack.c.b16 %v431, %v430
    %v522 = vpack.c.b16 %v433, %v432
    %v523 = vpack.c.b16 %v435, %v434
    %v524 = vpack.c.b16 %v437, %v436
    %v525 = vpack.c.b16 %v439, %v438
    %v526 = vpack.c.b16 %v441, %v440
    %v527 = vpack.c.b16 %v443, %v442
    %v528 = vpack.c.b16 %v445, %v444
    %v529 = vpack.c.b16 %v447, %v446
    %v530 = vpack.c.b16 %v449, %v448
    %v531 = vpack.c.b16 %v451, %v450
    %v532 = vpack.c.b16 %v453, %v452
    %v533 = vpack.c.b16 %v455, %v454
    %v534 = vpack.c.b16 %v457, %v456
    %v535 = vpack.c.b16 %v459, %v458
    %v536 = vpack.c.b16 %v461, %v460
    %v537 = vpack.c.b16 %v463, %v462
    %v538 = vpack.c.b16 %v465, %v464
    %v539 = vpack.c.b16 %v467, %v466
    %v540 = vpack.c.b16 %v469, %v468
    %v541 = vpack.c.b16 %v471, %v470
    %v542 = vpack.c.b16 %v473, %v472
    %v543 = vpack.c.b16 %v475, %v474
    %v544 = vpack.c.b16 %v477, %v476
    %v545 = vpack.c.b16 %v479, %v478
    %v546 = vpack.c.b16 %v481, %v480
    %v547 = vpack.c.b16 %v483, %v482
    %612 = vmatprep.subr.bf16.mxu0 0
    %613 = vmatpush1.bf16.msra.mxu0 %v491
    %614 = vmatprep.subr.bf16.mxu0 0
    %615 = vmatpush1.bf16.msra.mxu0 %v490
    %616 = vmatprep.subr.bf16.mxu0 0
    %617 = vmatpush1.bf16.msra.mxu0 %v489
    %618 = vmatprep.subr.bf16.mxu0 0
    %619 = vmatpush1.bf16.msra.mxu0 %v488
    %620 = vmatprep.subr.bf16.mxu0 0
    %621 = vmatpush1.bf16.msra.mxu0 %v487
    %622 = vmatprep.subr.bf16.mxu0 0
    %623 = vmatpush1.bf16.msra.mxu0 %v486
    %624 = vmatprep.subr.bf16.mxu0 0
    %625 = vmatpush1.bf16.msra.mxu0 %v485
    %626 = vmatprep.subr.bf16.mxu0 0
    %627 = vmatpush1.bf16.msra.mxu0 %v484
    %628 = vmatprep.subr.bf16.mxu0 0
    %629 = vmatpush2.bf16.msra.mxu0 %v499
    %630 = vmatprep.subr.bf16.mxu0 0
    %631 = vmatpush2.bf16.msra.mxu0 %v498
    %632 = vmatprep.subr.bf16.mxu0 0
    %633 = vmatpush2.bf16.msra.mxu0 %v497
    %634 = vmatprep.subr.bf16.mxu0 0
    %635 = vmatpush2.bf16.msra.mxu0 %v496
    %636 = vmatprep.subr.bf16.mxu0 0
    %637 = vmatpush2.bf16.msra.mxu0 %v495
    %638 = vmatprep.subr.bf16.mxu0 0
    %639 = vmatpush2.bf16.msra.mxu0 %v494
    %640 = vmatprep.subr.bf16.mxu0 0
    %641 = vmatpush2.bf16.msra.mxu0 %v493
    %642 = vmatprep.subr.bf16.mxu0 0
    %643 = vmatpush2.bf16.msra.mxu0 %v492
    %644 = vmatprep.mubr.bf16.mxu0 %v208
    %645 = vmatmul.mubr.bf16.gmra.mxu0 %v194
    %v646 = vpop.f32.mrf.mxu0
    %v647 = vadd.f32 %v168, %v646
    %v648 = vpop.f32.mrf.mxu0
    %v649 = vpop.f32.mrf.mxu0
    %v650 = vpop.f32.mrf.mxu0
    %651 = vdwg.mxu0
    %652 = vmatprep.subr.bf16.mxu0 0
    %653 = vmatpush1.bf16.msra.mxu0 %v507
    %654 = vmatprep.subr.bf16.mxu0 0
    %655 = vmatpush1.bf16.msra.mxu0 %v506
    %656 = vmatprep.subr.bf16.mxu0 0
    %657 = vmatpush1.bf16.msra.mxu0 %v505
    %658 = vmatprep.subr.bf16.mxu0 0
    %659 = vmatpush1.bf16.msra.mxu0 %v504
    %660 = vmatprep.subr.bf16.mxu0 0
    %661 = vmatpush1.bf16.msra.mxu0 %v503
    %662 = vmatprep.subr.bf16.mxu0 0
    %663 = vmatpush1.bf16.msra.mxu0 %v502
    %664 = vmatprep.subr.bf16.mxu0 0
    %665 = vmatpush1.bf16.msra.mxu0 %v501
    %666 = vmatprep.subr.bf16.mxu0 0
    %667 = vmatpush1.bf16.msra.mxu0 %v500
    %668 = vmatprep.subr.bf16.mxu0 0
    %669 = vmatpush2.bf16.msra.mxu0 %v515
    %670 = vmatprep.subr.bf16.mxu0 0
    %671 = vmatpush2.bf16.msra.mxu0 %v514
    %672 = vmatprep.subr.bf16.mxu0 0
    %673 = vmatpush2.bf16.msra.mxu0 %v513
    %674 = vmatprep.subr.bf16.mxu0 0
    %675 = vmatpush2.bf16.msra.mxu0 %v512
    %676 = vmatprep.subr.bf16.mxu0 0
    %677 = vmatpush2.bf16.msra.mxu0 %v511
    %678 = vmatprep.subr.bf16.mxu0 0
    %679 = vmatpush2.bf16.msra.mxu0 %v510
    %680 = vmatprep.subr.bf16.mxu0 0
    %681 = vmatpush2.bf16.msra.mxu0 %v509
    %682 = vmatprep.subr.bf16.mxu0 0
    %683 = vmatpush2.bf16.msra.mxu0 %v508
    %684 = vmatprep.mubr.bf16.mxu0 %v218
    %685 = vmatmul.mubr.bf16.gmra.mxu0 %v216
    %v686 = vpop.f32.mrf.mxu0
    %v687 = vadd.f32 %v647, %v686
    %v688 = vpop.f32.mrf.mxu0
    %v689 = vpop.f32.mrf.mxu0
    %v690 = vpop.f32.mrf.mxu0
    %691 = vdwg.mxu0
    %692 = vmatprep.subr.bf16.mxu0 0
    %693 = vmatpush1.bf16.msra.mxu0 %v523
    %694 = vmatprep.subr.bf16.mxu0 0
    %695 = vmatpush1.bf16.msra.mxu0 %v522
    %696 = vmatprep.subr.bf16.mxu0 0
    %697 = vmatpush1.bf16.msra.mxu0 %v521
    %698 = vmatprep.subr.bf16.mxu0 0
    %699 = vmatpush1.bf16.msra.mxu0 %v520
    %700 = vmatprep.subr.bf16.mxu0 0
    %701 = vmatpush1.bf16.msra.mxu0 %v519
    %702 = vmatprep.subr.bf16.mxu0 0
    %703 = vmatpush1.bf16.msra.mxu0 %v518
    %704 = vmatprep.subr.bf16.mxu0 0
    %705 = vmatpush1.bf16.msra.mxu0 %v517
    %706 = vmatprep.subr.bf16.mxu0 0
    %707 = vmatpush1.bf16.msra.mxu0 %v516
    %708 = vmatprep.subr.bf16.mxu0 0
    %709 = vmatpush2.bf16.msra.mxu0 %v531
    %710 = vmatprep.subr.bf16.mxu0 0
    %711 = vmatpush2.bf16.msra.mxu0 %v530
    %712 = vmatprep.subr.bf16.mxu0 0
    %713 = vmatpush2.bf16.msra.mxu0 %v529
    %714 = vmatprep.subr.bf16.mxu0 0
    %715 = vmatpush2.bf16.msra.mxu0 %v528
    %716 = vmatprep.subr.bf16.mxu0 0
    %717 = vmatpush2.bf16.msra.mxu0 %v527
    %718 = vmatprep.subr.bf16.mxu0 0
    %719 = vmatpush2.bf16.msra.mxu0 %v526
    %720 = vmatprep.subr.bf16.mxu0 0
    %721 = vmatpush2.bf16.msra.mxu0 %v525
    %722 = vmatprep.subr.bf16.mxu0 0
    %723 = vmatpush2.bf16.msra.mxu0 %v524
    %724 = vmatprep.mubr.bf16.mxu0 %v215
    %725 = vmatmul.mubr.bf16.gmra.mxu0 %v201
    %v726 = vpop.f32.mrf.mxu0
    %v727 = vadd.f32 %v687, %v726
    %v728 = vpop.f32.mrf.mxu0
    %v729 = vpop.f32.mrf.mxu0
    %v730 = vpop.f32.mrf.mxu0
    %731 = vdwg.mxu0
    %732 = vmatprep.subr.bf16.mxu0 0
    %733 = vmatpush1.bf16.msra.mxu0 %v539
    %734 = vmatprep.subr.bf16.mxu0 0
    %735 = vmatpush1.bf16.msra.mxu0 %v538
    %736 = vmatprep.subr.bf16.mxu0 0
    %737 = vmatpush1.bf16.msra.mxu0 %v537
    %738 = vmatprep.subr.bf16.mxu0 0
    %739 = vmatpush1.bf16.msra.mxu0 %v536
    %740 = vmatprep.subr.bf16.mxu0 0
    %741 = vmatpush1.bf16.msra.mxu0 %v535
    %742 = vmatprep.subr.bf16.mxu0 0
    %743 = vmatpush1.bf16.msra.mxu0 %v534
    %744 = vmatprep.subr.bf16.mxu0 0
    %745 = vmatpush1.bf16.msra.mxu0 %v533
    %746 = vmatprep.subr.bf16.mxu0 0
    %747 = vmatpush1.bf16.msra.mxu0 %v532
    %748 = vmatprep.subr.bf16.mxu0 0
    %749 = vmatpush2.bf16.msra.mxu0 %v547
    %750 = vmatprep.subr.bf16.mxu0 0
    %751 = vmatpush2.bf16.msra.mxu0 %v546
    %752 = vmatprep.subr.bf16.mxu0 0
    %753 = vmatpush2.bf16.msra.mxu0 %v545
    %754 = vmatprep.subr.bf16.mxu0 0
    %755 = vmatpush2.bf16.msra.mxu0 %v544
    %756 = vmatprep.subr.bf16.mxu0 0
    %757 = vmatpush2.bf16.msra.mxu0 %v543
    %758 = vmatprep.subr.bf16.mxu0 0
    %759 = vmatpush2.bf16.msra.mxu0 %v542
    %760 = vmatprep.subr.bf16.mxu0 0
    %761 = vmatpush2.bf16.msra.mxu0 %v541
    %762 = vmatprep.subr.bf16.mxu0 0
    %763 = vmatpush2.bf16.msra.mxu0 %v540
    %764 = vmatprep.mubr.bf16.mxu0 %v219
    %765 = vmatmul.mubr.bf16.gmra.mxu0 %v217
    %v766 = vpop.f32.mrf.mxu0
    %v767 = vadd.f32 %v727, %v766
    %v768 = vpop.f32.mrf.mxu0
    %v769 = vpop.f32.mrf.mxu0
    %v770 = vpop.f32.mrf.mxu0
    %771 = vdwg.mxu0
    %v772 = vmax.f32 %v767, 0.0
    %v773 = vld [vmem:[%s3] sm:$0xff]
    %v774 = vld [vmem:[%s3 + $0x8] sm:$0xff]
    %v775 = vld [vmem:[%s3 + $0x10] sm:$0xff]
    %v776 = vld [vmem:[%s3 + $0x18] sm:$0xff]
    %v777 = vld [vmem:[%s4] sm:$0x1]
    %v779 = vlaneseq
    %v780 = vshrl.u32 %v779, 7
    %v781 = vsub.s32 0, %v780
    %v782 = vrot.slane %v777, %v781
    %vm784 = vcmask 261120
    %v786 = vsel %vm784, %v772, 0
    %788 = vmatprep.subr.mxu0 0.0
    %789 = vmatpush1.msra.mxu0 0.0
    %790 = vmatprep.subr.mxu0 0.0
    %791 = vmatpush1.msra.mxu0 0.0
    %792 = vmatprep.subr.mxu0 0.0
    %793 = vmatpush1.msra.mxu0 0.0
    %794 = vmatprep.subr.mxu0 0.0
    %795 = vmatpush1.msra.mxu0 0.0
    %796 = vmatprep.subr.mxu0 0.0
    %797 = vmatpush1.msra.mxu0 0.0
    %798 = vmatprep.subr.mxu0 0.0
    %799 = vmatpush1.msra.mxu0 0.0
    %800 = vmatprep.subr.mxu0 0.0
    %801 = vmatpush1.msra.mxu0 0.0
    %802 = vmatprep.subr.mxu0 0.0
    %803 = vmatpush1.msra.mxu0 0.0
    %804 = vmatprep.subr.mxu0 0.0
    %805 = vmatpush1.msra.mxu0 0.0
    %806 = vmatprep.subr.mxu0 0.0
    %807 = vmatpush1.msra.mxu0 0.0
    %808 = vmatprep.subr.mxu0 0.0
    %809 = vmatpush1.msra.mxu0 0.0
    %810 = vmatprep.subr.mxu0 0.0
    %811 = vmatpush1.msra.mxu0 0.0
    %812 = vmatprep.subr.mxu0 0.0
    %813 = vmatpush1.msra.mxu0 %v776
    %814 = vmatprep.subr.mxu0 0.0
    %815 = vmatpush1.msra.mxu0 %v775
    %816 = vmatprep.subr.mxu0 0.0
    %817 = vmatpush1.msra.mxu0 %v774
    %818 = vmatprep.subr.mxu0 0.0
    %819 = vmatpush1.msra.mxu0 %v773
    %820 = vmatprep.subr.mxu0 0.0
    %821 = vmatpush2.msra.mxu0 0.0
    %822 = vmatprep.subr.mxu0 0.0
    %823 = vmatpush2.msra.mxu0 0.0
    %824 = vmatprep.subr.mxu0 0.0
    %825 = vmatpush2.msra.mxu0 0.0
    %826 = vmatprep.subr.mxu0 0.0
    %827 = vmatpush2.msra.mxu0 0.0
    %828 = vmatprep.subr.mxu0 0.0
    %829 = vmatpush2.msra.mxu0 0.0
    %830 = vmatprep.subr.mxu0 0.0
    %831 = vmatpush2.msra.mxu0 0.0
    %832 = vmatprep.subr.mxu0 0.0
    %833 = vmatpush2.msra.mxu0 0.0
    %834 = vmatprep.subr.mxu0 0.0
    %835 = vmatpush2.msra.mxu0 0.0
    %836 = vmatprep.subr.mxu0 0.0
    %837 = vmatpush2.msra.mxu0 0.0
    %838 = vmatprep.subr.mxu0 0.0
    %839 = vmatpush2.msra.mxu0 0.0
    %840 = vmatprep.subr.mxu0 0.0
    %841 = vmatpush2.msra.mxu0 0.0
    %842 = vmatprep.subr.mxu0 0.0
    %843 = vmatpush2.msra.mxu0 0.0
    %844 = vmatprep.subr.mxu0 0.0
    %845 = vmatpush2.msra.mxu0 0.0
    %846 = vmatprep.subr.mxu0 0.0
    %847 = vmatpush2.msra.mxu0 0.0
    %848 = vmatprep.subr.mxu0 0.0
    %849 = vmatpush2.msra.mxu0 0.0
    %850 = vmatprep.subr.mxu0 0.0
    %851 = vmatpush2.msra.mxu0 0.0
    %852 = vmatprep.mubr.f32.mxu0 0.0
    %853 = vmatmul.mubr.f32.gmra.mxu0 %v786
    %v854 = vpop.f32.mrf.mxu0
    %v855 = vadd.f32 %v782, %v854
    %v856 = vpop.f32.mrf.mxu0
    %857 = vdwg.mxu0
    %v858 = vmax.f32 %v855, 0.0
    %v859 = vld [vmem:[%s5] sm:$0xff]
    %v860 = vld [vmem:[%s5 + $0x8] sm:$0xff]
    %v861 = vld [vmem:[%s6] sm:$0x1]
    %v863 = vlaneseq
    %v864 = vshrl.u32 %v863, 7
    %v865 = vsub.s32 0, %v864
    %v866 = vrot.slane %v861, %v865
    %vm868 = vcmask 130048
    %v870 = vsel %vm868, %v858, 0
    %872 = vmatprep.subr.mxu0 0.0
    %873 = vmatpush1.msra.mxu0 0.0
    %874 = vmatprep.subr.mxu0 0.0
    %875 = vmatpush1.msra.mxu0 0.0
    %876 = vmatprep.subr.mxu0 0.0
    %877 = vmatpush1.msra.mxu0 0.0
    %878 = vmatprep.subr.mxu0 0.0
    %879 = vmatpush1.msra.mxu0 0.0
    %880 = vmatprep.subr.mxu0 0.0
    %881 = vmatpush1.msra.mxu0 0.0
    %882 = vmatprep.subr.mxu0 0.0
    %883 = vmatpush1.msra.mxu0 0.0
    %884 = vmatprep.subr.mxu0 0.0
    %885 = vmatpush1.msra.mxu0 0.0
    %886 = vmatprep.subr.mxu0 0.0
    %887 = vmatpush1.msra.mxu0 0.0
    %888 = vmatprep.subr.mxu0 0.0
    %889 = vmatpush1.msra.mxu0 0.0
    %890 = vmatprep.subr.mxu0 0.0
    %891 = vmatpush1.msra.mxu0 0.0
    %892 = vmatprep.subr.mxu0 0.0
    %893 = vmatpush1.msra.mxu0 0.0
    %894 = vmatprep.subr.mxu0 0.0
    %895 = vmatpush1.msra.mxu0 0.0
    %896 = vmatprep.subr.mxu0 0.0
    %897 = vmatpush1.msra.mxu0 0.0
    %898 = vmatprep.subr.mxu0 0.0
    %899 = vmatpush1.msra.mxu0 0.0
    %900 = vmatprep.subr.mxu0 0.0
    %901 = vmatpush1.msra.mxu0 %v860
    %902 = vmatprep.subr.mxu0 0.0
    %903 = vmatpush1.msra.mxu0 %v859
    %904 = vmatprep.subr.mxu0 0.0
    %905 = vmatpush2.msra.mxu0 0.0
    %906 = vmatprep.subr.mxu0 0.0
    %907 = vmatpush2.msra.mxu0 0.0
    %908 = vmatprep.subr.mxu0 0.0
    %909 = vmatpush2.msra.mxu0 0.0
    %910 = vmatprep.subr.mxu0 0.0
    %911 = vmatpush2.msra.mxu0 0.0
    %912 = vmatprep.subr.mxu0 0.0
    %913 = vmatpush2.msra.mxu0 0.0
    %914 = vmatprep.subr.mxu0 0.0
    %915 = vmatpush2.msra.mxu0 0.0
    %916 = vmatprep.subr.mxu0 0.0
    %917 = vmatpush2.msra.mxu0 0.0
    %918 = vmatprep.subr.mxu0 0.0
    %919 = vmatpush2.msra.mxu0 0.0
    %920 = vmatprep.subr.mxu0 0.0
    %921 = vmatpush2.msra.mxu0 0.0
    %922 = vmatprep.subr.mxu0 0.0
    %923 = vmatpush2.msra.mxu0 0.0
    %924 = vmatprep.subr.mxu0 0.0
    %925 = vmatpush2.msra.mxu0 0.0
    %926 = vmatprep.subr.mxu0 0.0
    %927 = vmatpush2.msra.mxu0 0.0
    %928 = vmatprep.subr.mxu0 0.0
    %929 = vmatpush2.msra.mxu0 0.0
    %930 = vmatprep.subr.mxu0 0.0
    %931 = vmatpush2.msra.mxu0 0.0
    %932 = vmatprep.subr.mxu0 0.0
    %933 = vmatpush2.msra.mxu0 0.0
    %934 = vmatprep.subr.mxu0 0.0
    %935 = vmatpush2.msra.mxu0 0.0
    %936 = vmatprep.mubr.f32.mxu0 0.0
    %937 = vmatmul.mubr.f32.gmra.mxu0 %v870
    %v938 = vpop.f32.mrf.mxu0
    %v939 = vadd.f32 %v866, %v938
    %v940 = vpop.f32.mrf.mxu0
    %941 = vdwg.mxu0
    %v942 = vmax.f32 %v939, 0.0
    %v943 = vpack.c.bf16 %v942, %v942
    %v944 = vld [vmem:[%s7] sm:$0xff]
    %v945 = vld [vmem:[%s7 + $0x8] sm:$0xff]
    %v946 = vld [vmem:[%s7 + $0x10] sm:$0xff]
    %v947 = vld [vmem:[%s7 + $0x18] sm:$0xff]
    %v948 = vld [vmem:[%s7 + $0x20] sm:$0xff]
    %v949 = vld [vmem:[%s7 + $0x28] sm:$0xff]
    %v950 = vld [vmem:[%s7 + $0x30] sm:$0xff]
    %v951 = vld [vmem:[%s7 + $0x38] sm:$0xff]
    %v952 = vld [vmem:[%s7 + $0x40] sm:$0xff]
    %v953 = vld [vmem:[%s7 + $0x48] sm:$0xff]
    %v954 = vld [vmem:[%s7 + $0x50] sm:$0xff]
    %v955 = vld [vmem:[%s7 + $0x58] sm:$0xff]
    %v956 = vld [vmem:[%s7 + $0x60] sm:$0xff]
    %v957 = vld [vmem:[%s7 + $0x68] sm:$0xff]
    %v958 = vld [vmem:[%s7 + $0x70] sm:$0xff]
    %v959 = vld [vmem:[%s7 + $0x78] sm:$0xff]
    %v960 = vld [vmem:[%s8] sm:$0xff]
    %v962 = vlaneseq
    %v963 = vshrl.u32 %v962, 7
    %v964 = vsub.s32 0, %v963
    %v965 = vrot.slane %v960, %v964
    %v966 = vlaneseq
    %v967 = vshrl.u32 %v966, 7
    %v968 = vsub.s32 1, %v967
    %v969 = vrot.slane %v960, %v968
    %v970 = vlaneseq
    %v971 = vshrl.u32 %v970, 7
    %v972 = vsub.s32 2, %v971
    %v973 = vrot.slane %v960, %v972
    %v974 = vlaneseq
    %v975 = vshrl.u32 %v974, 7
    %v976 = vsub.s32 3, %v975
    %v977 = vrot.slane %v960, %v976
    %v978 = vlaneseq
    %v979 = vshrl.u32 %v978, 7
    %v980 = vsub.s32 4, %v979
    %v981 = vrot.slane %v960, %v980
    %v982 = vlaneseq
    %v983 = vshrl.u32 %v982, 7
    %v984 = vsub.s32 5, %v983
    %v985 = vrot.slane %v960, %v984
    %v986 = vlaneseq
    %v987 = vshrl.u32 %v986, 7
    %v988 = vsub.s32 6, %v987
    %v989 = vrot.slane %v960, %v988
    %v990 = vlaneseq
    %v991 = vshrl.u32 %v990, 7
    %v992 = vsub.s32 7, %v991
    %v993 = vrot.slane %v960, %v992
    %v1018 = vunpack.c.l.b16 %v944
    %v1019 = vunpack.c.h.b16 %v944
    %v1020 = vunpack.c.l.b16 %v945
    %v1021 = vunpack.c.h.b16 %v945
    %v1022 = vunpack.c.l.b16 %v946
    %v1023 = vunpack.c.h.b16 %v946
    %v1024 = vunpack.c.l.b16 %v947
    %v1025 = vunpack.c.h.b16 %v947
    %v1026 = vunpack.c.l.b16 %v948
    %v1027 = vunpack.c.h.b16 %v948
    %v1028 = vunpack.c.l.b16 %v949
    %v1029 = vunpack.c.h.b16 %v949
    %v1030 = vunpack.c.l.b16 %v950
    %v1031 = vunpack.c.h.b16 %v950
    %v1032 = vunpack.c.l.b16 %v951
    %v1033 = vunpack.c.h.b16 %v951
    %v1034 = vunpack.c.l.b16 %v952
    %v1035 = vunpack.c.h.b16 %v952
    %v1036 = vunpack.c.l.b16 %v953
    %v1037 = vunpack.c.h.b16 %v953
    %v1038 = vunpack.c.l.b16 %v954
    %v1039 = vunpack.c.h.b16 %v954
    %v1040 = vunpack.c.l.b16 %v955
    %v1041 = vunpack.c.h.b16 %v955
    %v1042 = vunpack.c.l.b16 %v956
    %v1043 = vunpack.c.h.b16 %v956
    %v1044 = vunpack.c.l.b16 %v957
    %v1045 = vunpack.c.h.b16 %v957
    %v1046 = vunpack.c.l.b16 %v958
    %v1047 = vunpack.c.h.b16 %v958
    %v1048 = vunpack.c.l.b16 %v959
    %v1049 = vunpack.c.h.b16 %v959
    %v1050 = vpack.c.b16 %v1026, %v1018
    %v1051 = vpack.c.b16 %v1027, %v1019
    %v1052 = vpack.c.b16 %v1028, %v1020
    %v1053 = vpack.c.b16 %v1029, %v1021
    %v1054 = vpack.c.b16 %v1030, %v1022
    %v1055 = vpack.c.b16 %v1031, %v1023
    %v1056 = vpack.c.b16 %v1032, %v1024
    %v1057 = vpack.c.b16 %v1033, %v1025
    %v1058 = vpack.c.b16 %v1042, %v1034
    %v1059 = vpack.c.b16 %v1043, %v1035
    %v1060 = vpack.c.b16 %v1044, %v1036
    %v1061 = vpack.c.b16 %v1045, %v1037
    %v1062 = vpack.c.b16 %v1046, %v1038
    %v1063 = vpack.c.b16 %v1047, %v1039
    %v1064 = vpack.c.b16 %v1048, %v1040
    %v1065 = vpack.c.b16 %v1049, %v1041
    %v1083 = vsel %vm784, %v943, 0
    %1085 = vmatprep.subr.bf16.mxu0 0
    %1086 = vmatpush1.bf16.msra.mxu0 0
    %1087 = vmatprep.subr.bf16.mxu0 0
    %1088 = vmatpush1.bf16.msra.mxu0 0
    %1089 = vmatprep.subr.bf16.mxu0 0
    %1090 = vmatpush1.bf16.msra.mxu0 0
    %1091 = vmatprep.subr.bf16.mxu0 0
    %1092 = vmatpush1.bf16.msra.mxu0 0
    %1093 = vmatprep.subr.bf16.mxu0 0
    %1094 = vmatpush1.bf16.msra.mxu0 0
    %1095 = vmatprep.subr.bf16.mxu0 0
    %1096 = vmatpush1.bf16.msra.mxu0 0
    %1097 = vmatprep.subr.bf16.mxu0 %v1059
    %1098 = vmatpush1.bf16.msra.mxu0 %v1058
    %1099 = vmatprep.subr.bf16.mxu0 %v1051
    %1100 = vmatpush1.bf16.msra.mxu0 %v1050
    %1101 = vmatprep.subr.bf16.mxu0 0
    %1102 = vmatpush2.bf16.msra.mxu0 0
    %1103 = vmatprep.subr.bf16.mxu0 0
    %1104 = vmatpush2.bf16.msra.mxu0 0
    %1105 = vmatprep.subr.bf16.mxu0 0
    %1106 = vmatpush2.bf16.msra.mxu0 0
    %1107 = vmatprep.subr.bf16.mxu0 0
    %1108 = vmatpush2.bf16.msra.mxu0 0
    %1109 = vmatprep.subr.bf16.mxu0 0
    %1110 = vmatpush2.bf16.msra.mxu0 0
    %1111 = vmatprep.subr.bf16.mxu0 0
    %1112 = vmatpush2.bf16.msra.mxu0 0
    %1113 = vmatprep.subr.bf16.mxu0 0
    %1114 = vmatpush2.bf16.msra.mxu0 0
    %1115 = vmatprep.subr.bf16.mxu0 0
    %1116 = vmatpush2.bf16.msra.mxu0 0
    %1117 = vmatprep.mubr.bf16.mxu0 0
    %1118 = vmatmul.mubr.bf16.gmra.mxu0 %v1083
    %v1119 = vpop.f32.mrf.mxu0
    %v1120 = vadd.f32 %v965, %v1119
    %v1121 = vpop.f32.mrf.mxu0
    %v1122 = vadd.f32 %v969, %v1121
    %v1123 = vpop.f32.mrf.mxu0
    %v1124 = vpop.f32.mrf.mxu0
    %1125 = vdwg.mxu0
    %1126 = vmatprep.subr.bf16.mxu0 0
    %1127 = vmatpush1.bf16.msra.mxu0 0
    %1128 = vmatprep.subr.bf16.mxu0 0
    %1129 = vmatpush1.bf16.msra.mxu0 0
    %1130 = vmatprep.subr.bf16.mxu0 0
    %1131 = vmatpush1.bf16.msra.mxu0 0
    %1132 = vmatprep.subr.bf16.mxu0 0
    %1133 = vmatpush1.bf16.msra.mxu0 0
    %1134 = vmatprep.subr.bf16.mxu0 0
    %1135 = vmatpush1.bf16.msra.mxu0 0
    %1136 = vmatprep.subr.bf16.mxu0 0
    %1137 = vmatpush1.bf16.msra.mxu0 0
    %1138 = vmatprep.subr.bf16.mxu0 %v1061
    %1139 = vmatpush1.bf16.msra.mxu0 %v1060
    %1140 = vmatprep.subr.bf16.mxu0 %v1053
    %1141 = vmatpush1.bf16.msra.mxu0 %v1052
    %1142 = vmatprep.subr.bf16.mxu0 0
    %1143 = vmatpush2.bf16.msra.mxu0 0
    %1144 = vmatprep.subr.bf16.mxu0 0
    %1145 = vmatpush2.bf16.msra.mxu0 0
    %1146 = vmatprep.subr.bf16.mxu0 0
    %1147 = vmatpush2.bf16.msra.mxu0 0
    %1148 = vmatprep.subr.bf16.mxu0 0
    %1149 = vmatpush2.bf16.msra.mxu0 0
    %1150 = vmatprep.subr.bf16.mxu0 0
    %1151 = vmatpush2.bf16.msra.mxu0 0
    %1152 = vmatprep.subr.bf16.mxu0 0
    %1153 = vmatpush2.bf16.msra.mxu0 0
    %1154 = vmatprep.subr.bf16.mxu0 0
    %1155 = vmatpush2.bf16.msra.mxu0 0
    %1156 = vmatprep.subr.bf16.mxu0 0
    %1157 = vmatpush2.bf16.msra.mxu0 0
    %1158 = vmatprep.mubr.bf16.mxu0 0
    %1159 = vmatmul.mubr.bf16.gmra.mxu0 %v1083
    %v1160 = vpop.f32.mrf.mxu0
    %v1161 = vadd.f32 %v973, %v1160
    %v1162 = vpop.f32.mrf.mxu0
    %v1163 = vadd.f32 %v977, %v1162
    %v1164 = vpop.f32.mrf.mxu0
    %v1165 = vpop.f32.mrf.mxu0
    %1166 = vdwg.mxu0
    %1167 = vmatprep.subr.bf16.mxu0 0
    %1168 = vmatpush1.bf16.msra.mxu0 0
    %1169 = vmatprep.subr.bf16.mxu0 0
    %1170 = vmatpush1.bf16.msra.mxu0 0
    %1171 = vmatprep.subr.bf16.mxu0 0
    %1172 = vmatpush1.bf16.msra.mxu0 0
    %1173 = vmatprep.subr.bf16.mxu0 0
    %1174 = vmatpush1.bf16.msra.mxu0 0
    %1175 = vmatprep.subr.bf16.mxu0 0
    %1176 = vmatpush1.bf16.msra.mxu0 0
    %1177 = vmatprep.subr.bf16.mxu0 0
    %1178 = vmatpush1.bf16.msra.mxu0 0
    %1179 = vmatprep.subr.bf16.mxu0 %v1063
    %1180 = vmatpush1.bf16.msra.mxu0 %v1062
    %1181 = vmatprep.subr.bf16.mxu0 %v1055
    %1182 = vmatpush1.bf16.msra.mxu0 %v1054
    %1183 = vmatprep.subr.bf16.mxu0 0
    %1184 = vmatpush2.bf16.msra.mxu0 0
    %1185 = vmatprep.subr.bf16.mxu0 0
    %1186 = vmatpush2.bf16.msra.mxu0 0
    %1187 = vmatprep.subr.bf16.mxu0 0
    %1188 = vmatpush2.bf16.msra.mxu0 0
    %1189 = vmatprep.subr.bf16.mxu0 0
    %1190 = vmatpush2.bf16.msra.mxu0 0
    %1191 = vmatprep.subr.bf16.mxu0 0
    %1192 = vmatpush2.bf16.msra.mxu0 0
    %1193 = vmatprep.subr.bf16.mxu0 0
    %1194 = vmatpush2.bf16.msra.mxu0 0
    %1195 = vmatprep.subr.bf16.mxu0 0
    %1196 = vmatpush2.bf16.msra.mxu0 0
    %1197 = vmatprep.subr.bf16.mxu0 0
    %1198 = vmatpush2.bf16.msra.mxu0 0
    %1199 = vmatprep.mubr.bf16.mxu0 0
    %1200 = vmatmul.mubr.bf16.gmra.mxu0 %v1083
    %v1201 = vpop.f32.mrf.mxu0
    %v1202 = vadd.f32 %v981, %v1201
    %v1203 = vpop.f32.mrf.mxu0
    %v1204 = vadd.f32 %v985, %v1203
    %v1205 = vpop.f32.mrf.mxu0
    %v1206 = vpop.f32.mrf.mxu0
    %1207 = vdwg.mxu0
    %1208 = vmatprep.subr.bf16.mxu0 0
    %1209 = vmatpush1.bf16.msra.mxu0 0
    %1210 = vmatprep.subr.bf16.mxu0 0
    %1211 = vmatpush1.bf16.msra.mxu0 0
    %1212 = vmatprep.subr.bf16.mxu0 0
    %1213 = vmatpush1.bf16.msra.mxu0 0
    %1214 = vmatprep.subr.bf16.mxu0 0
    %1215 = vmatpush1.bf16.msra.mxu0 0
    %1216 = vmatprep.subr.bf16.mxu0 0
    %1217 = vmatpush1.bf16.msra.mxu0 0
    %1218 = vmatprep.subr.bf16.mxu0 0
    %1219 = vmatpush1.bf16.msra.mxu0 0
    %1220 = vmatprep.subr.bf16.mxu0 %v1065
    %1221 = vmatpush1.bf16.msra.mxu0 %v1064
    %1222 = vmatprep.subr.bf16.mxu0 %v1057
    %1223 = vmatpush1.bf16.msra.mxu0 %v1056
    %1224 = vmatprep.subr.bf16.mxu0 0
    %1225 = vmatpush2.bf16.msra.mxu0 0
    %1226 = vmatprep.subr.bf16.mxu0 0
    %1227 = vmatpush2.bf16.msra.mxu0 0
    %1228 = vmatprep.subr.bf16.mxu0 0
    %1229 = vmatpush2.bf16.msra.mxu0 0
    %1230 = vmatprep.subr.bf16.mxu0 0
    %1231 = vmatpush2.bf16.msra.mxu0 0
    %1232 = vmatprep.subr.bf16.mxu0 0
    %1233 = vmatpush2.bf16.msra.mxu0 0
    %1234 = vmatprep.subr.bf16.mxu0 0
    %1235 = vmatpush2.bf16.msra.mxu0 0
    %1236 = vmatprep.subr.bf16.mxu0 0
    %1237 = vmatpush2.bf16.msra.mxu0 0
    %1238 = vmatprep.subr.bf16.mxu0 0
    %1239 = vmatpush2.bf16.msra.mxu0 0
    %1240 = vmatprep.mubr.bf16.mxu0 0
    %1241 = vmatmul.mubr.bf16.gmra.mxu0 %v1083
    %v1242 = vpop.f32.mrf.mxu0
    %v1243 = vadd.f32 %v989, %v1242
    %v1244 = vpop.f32.mrf.mxu0
    %v1245 = vadd.f32 %v993, %v1244
    %v1246 = vpop.f32.mrf.mxu0
    %v1247 = vpop.f32.mrf.mxu0
    %1248 = vdwg.mxu0
    %v1249 = vsub.f32 0.0, %v1120
    %v1250 = vsub.f32 0.0, %v1122
    %v1251 = vsub.f32 0.0, %v1161
    %v1252 = vsub.f32 0.0, %v1163
    %v1253 = vsub.f32 0.0, %v1202
    %v1254 = vsub.f32 0.0, %v1204
    %v1255 = vsub.f32 0.0, %v1243
    %v1256 = vsub.f32 0.0, %v1245
    %v1257 = vmul.f32 %v1249, 1.442695
    %v1258 = vpow.pop %v1257
    %v1259 = vmul.f32 %v1250, 1.442695
    %v1260 = vpow.pop %v1259
    %v1261 = vmul.f32 %v1251, 1.442695
    %v1262 = vpow.pop %v1261
    %v1263 = vmul.f32 %v1252, 1.442695
    %v1264 = vpow.pop %v1263
    %v1265 = vmul.f32 %v1253, 1.442695
    %v1266 = vpow.pop %v1265
    %v1267 = vmul.f32 %v1254, 1.442695
    %v1268 = vpow.pop %v1267
    %v1269 = vmul.f32 %v1255, 1.442695
    %v1270 = vpow.pop %v1269
    %v1271 = vmul.f32 %v1256, 1.442695
    %v1272 = vpow.pop %v1271
    %v1273 = vadd.f32 %v1258, 1.0
    %v1274 = vadd.f32 %v1260, 1.0
    %v1275 = vadd.f32 %v1262, 1.0
    %v1276 = vadd.f32 %v1264, 1.0
    %v1277 = vadd.f32 %v1266, 1.0
    %v1278 = vadd.f32 %v1268, 1.0
    %v1279 = vadd.f32 %v1270, 1.0
    %v1280 = vadd.f32 %v1272, 1.0
    %v1281 = vrcp.pop %v1273
    %v1282 = vrcp.pop %v1274
    %v1283 = vrcp.pop %v1275
    %v1284 = vrcp.pop %v1276
    %v1285 = vrcp.pop %v1277
    %v1286 = vrcp.pop %v1278
    %v1287 = vrcp.pop %v1279
    %v1288 = vrcp.pop %v1280
    %v1289 = vpack.c.bf16 %v1281, %v1281
    %v1290 = vpack.c.bf16 %v1282, %v1282
    %v1291 = vpack.c.bf16 %v1283, %v1283
    %v1292 = vpack.c.bf16 %v1284, %v1284
    %v1293 = vpack.c.bf16 %v1285, %v1285
    %v1294 = vpack.c.bf16 %v1286, %v1286
    %v1295 = vpack.c.bf16 %v1287, %v1287
    %v1296 = vpack.c.bf16 %v1288, %v1288
    %v1305 = vcombine.low %v1289, %v1290
    %v1306 = vcombine.low %v1291, %v1292
    %v1307 = vcombine.low %v1293, %v1294
    %v1308 = vcombine.low %v1295, %v1296
    %v1310 = vunpack.c.l.s4 1966171168
    %v1311 = vunpack.c.0.s8 %v1310
    %v1312 = vlaneseq
    %v1313 = vshrl.u32 %v1312, 7
    %v1314 = vsub.s32 %v1311, %v1313
    %v1315 = vrot.slane %v1305, %v1314
    %v1317 = vunpack.c.l.s4 1966171168
    %v1318 = vunpack.c.0.s8 %v1317
    %v1319 = vlaneseq
    %v1320 = vshrl.u32 %v1319, 7
    %v1321 = vsub.s32 %v1318, %v1320
    %v1322 = vrot.slane %v1306, %v1321
    %v1324 = vunpack.c.l.s4 1966171168
    %v1325 = vunpack.c.0.s8 %v1324
    %v1326 = vlaneseq
    %v1327 = vshrl.u32 %v1326, 7
    %v1328 = vsub.s32 %v1325, %v1327
    %v1329 = vrot.slane %v1307, %v1328
    %v1331 = vunpack.c.l.s4 1966171168
    %v1332 = vunpack.c.0.s8 %v1331
    %v1333 = vlaneseq
    %v1334 = vshrl.u32 %v1333, 7
    %v1335 = vsub.s32 %v1332, %v1334
    %v1336 = vrot.slane %v1308, %v1335
    %v1337 = vcombine.low %v1315, %v1322
    %v1338 = vcombine.low %v1329, %v1336
    %v1340 = vunpack.c.l.s4 1966171168
    %v1341 = vunpack.c.0.s8 %v1340
    %v1342 = vlaneseq
    %v1343 = vshrl.u32 %v1342, 7
    %v1344 = vsub.s32 %v1341, %v1343
    %v1345 = vrot.slane %v1337, %v1344
    %v1347 = vunpack.c.l.s4 1966171168
    %v1348 = vunpack.c.0.s8 %v1347
    %v1349 = vlaneseq
    %v1350 = vshrl.u32 %v1349, 7
    %v1351 = vsub.s32 %v1348, %v1350
    %v1352 = vrot.slane %v1338, %v1351
    %v1353 = vcombine.low %v1345, %v1352
    %1355 = vst [vmem:[#allocation2] sm:$0xff] %v1353
    // Predicated region
    $region38: #{tpu_custom_call.1} parent=1 // pred_check
      _
    $region39: #{tpu_custom_call.1} parent=1 // pred_check_branch
      %1357 = sbr.rel (0) target = $region41
    $region40: #{tpu_custom_call.1} parent=1 // pred_region
      %s1359 = ssub.s32 128, 128
      %1360 = vsyncadd [#allocation3], %s1359
      %s1362 = sshll.u32 [#allocation2], 4
      %s1363 = int_to_ptr.vmem [resolvable:$true] %s1362
      %1365 = dma.vmem_to_hbm [thread:$0]  %s1363, 128, %s9, [#allocation3]
    $region41: #{tpu_custom_call.1} parent=1 // pred_fallthru
      _
    // Predicated region
    $region42: #{tpu_custom_call.1} parent=1 // pred_check
      _
    $region43: #{tpu_custom_call.1} parent=1 // pred_check_branch
      %1367 = sbr.rel (0) target = $region45
    $region44: #{tpu_custom_call.1} parent=1 // pred_region
      %1368 = dma.done [#allocation3], 128
    $region45: #{tpu_custom_call.1} parent=1 // pred_fallthru
      _
    %1369 = vsyncpa [#allocation3], 1

</llo_original>
